<compile_context>
chip_gen: v7x
topology: tpu7x:2x2x1
jax: 0.10.0
libtpu: 0.0.40
codegen_flags: <defaults>
</compile_context>

<pallas_src>
import functools
import math

import jax
import jax.numpy as jnp
from jax.experimental import pallas as pl
from jax.experimental.pallas import tpu as pltpu


def _loss_block_kernel(pred_ref, target_ref, mask_ref, out_ref, *,
                       kvals, pad, lambda_pos, lambda_vr):
    """One [c_blk, Tp] tile (time on lanes): fused log-cosh + van-Rossum partial sum."""
    p = pred_ref[...].astype(jnp.float32)      # [c_blk, Tp]
    t = target_ref[...].astype(jnp.float32)    # [c_blk, Tp]
    m = mask_ref[...].astype(jnp.float32)      # [1, Tp]  -> broadcasts over channels

    e = p - t                                  # shared by both loss terms

    # ---- position term: log(cosh(e + 1e-12)), numerically stable 2-EUP form ----
    a = jnp.abs(e + jnp.float32(1e-12))
    log_cosh = a + jnp.log(1.0 + jnp.exp(-2.0 * a)) - jnp.float32(math.log(2.0))

    # ---- van-Rossum term: f = conv1d along time of e with exp kernel (zero padded) ----
    # f[t] = sum_k w[k] * e[t + k - pad], with e treated as 0 outside the valid range.
    # The wrapper zero-pads time to Tp, so rolled-in values beyond T are already zero;
    # the explicit validity mask handles the remaining wrap-around at the tile edges.
    c_blk, Tp = e.shape
    t_idx = jax.lax.broadcasted_iota(jnp.int32, (c_blk, Tp), 1)
    f = jnp.zeros_like(e)
    for k, w in enumerate(kvals):              # static unrolled (L = len(kvals), e.g. 6)
        s = k - pad                            # source offset along time
        if s == 0:
            shifted = e
        else:
            # shifted[t] = e[(t + s) mod Tp]   (lane rotation -> XLU slot)
            shifted = pltpu.roll(e, (-s) % Tp, axis=1)
        valid = jnp.logical_and(t_idx >= -s, t_idx < Tp - s)
        f = f + jnp.float32(w) * jnp.where(valid, shifted, 0.0)

    # ---- fused masked reduction; division by `count` happens once, outside ----
    combined = jnp.float32(lambda_pos) * log_cosh + jnp.float32(lambda_vr) * (f * f)
    partial = jnp.sum(combined * m)
    out_ref[...] = partial + jnp.zeros(out_ref.shape, jnp.float32)


def _pick_c_block(C, Tp, max_tile_bytes=1 << 20):
    """Largest channel chunk that is all of C, or a multiple-of-8 divisor of C, keeping
    one f32 [c_blk, Tp] tile under max_tile_bytes (sized for v7x's 64 MiB VMEM budget
    with double-buffered inputs plus in-kernel temporaries)."""
    if C * Tp * 4 <= max_tile_bytes:
        return C
    fitting = [cb for cb in range(8, C, 8)
               if C % cb == 0 and cb * Tp * 4 <= max_tile_bytes]
    return max(fitting) if fitting else C


def spike_position_loss_delta(pred, target, mask=None, *,
                              tau=1.0, lambda_pos=1.0, lambda_vr=0.01):
    """pred, target: [B, T, C] arrays; mask: optional [B, T]. Returns scalar loss."""
    B, T, C = pred.shape
    L = int(6 * tau)
    pad = L // 2
    # deterministic "buffer" init, mirrors register_buffer('vr_kernel', exp(-t/tau))
    kvals = tuple(math.exp(-t_i / tau) for t_i in range(L))

    if mask is None:
        mask_f = jnp.ones((B, T), jnp.float32)
    else:
        mask_f = mask.astype(jnp.float32)

    # number of selected elements; clamped so an all-zero mask gives 0 instead of NaN
    count = jnp.maximum(jnp.sum(mask_f) * jnp.float32(C), jnp.float32(1.0))

    # Lane-dense layout: time on lanes, zero-padded up to a multiple of 128.  The zero
    # padding coincides with conv1d's own zero padding and padded positions carry
    # mask 0, so the loss value is unchanged.
    Tp = ((T + 127) // 128) * 128
    p_bct = jnp.transpose(pred, (0, 2, 1))      # [B, C, T]  (dtype preserved; cast in kernel)
    t_bct = jnp.transpose(target, (0, 2, 1))
    if Tp != T:
        p_bct = jnp.pad(p_bct, ((0, 0), (0, 0), (0, Tp - T)))
        t_bct = jnp.pad(t_bct, ((0, 0), (0, 0), (0, Tp - T)))
        mask_f = jnp.pad(mask_f, ((0, 0), (0, Tp - T)))
    m_b1t = mask_f[:, None, :]                  # [B, 1, Tp]

    c_blk = _pick_c_block(C, Tp)
    n_c = C // c_blk

    kernel = functools.partial(_loss_block_kernel, kvals=kvals, pad=pad,
                               lambda_pos=float(lambda_pos),
                               lambda_vr=float(lambda_vr))

    cost = pl.CostEstimate(
        flops=int(B * C * Tp * (4 * L + 12)),
        transcendentals=int(2 * B * C * Tp),
        bytes_accessed=int(4 * (2 * B * C * Tp + B * Tp + B * n_c * 128)),
    )

    partials = pl.pallas_call(
        kernel,
        out_shape=jax.ShapeDtypeStruct((B, n_c, 1, 128), jnp.float32),
        grid=(B, n_c),
        in_specs=[
            pl.BlockSpec((None, c_blk, Tp), lambda b, c: (b, c, 0)),
            pl.BlockSpec((None, c_blk, Tp), lambda b, c: (b, c, 0)),
            pl.BlockSpec((None, 1, Tp), lambda b, c: (b, 0, 0)),
        ],
        out_specs=pl.BlockSpec((1, 1, 1, 128), lambda b, c: (b, c, 0, 0)),
        compiler_params=pltpu.CompilerParams(
            dimension_semantics=("parallel", "parallel"),
            vmem_limit_bytes=32 * 1024 * 1024,
        ),
        cost_estimate=cost,
    )(p_bct, t_bct, m_b1t)

    total = jnp.sum(partials[:, :, 0, 0])       # tiny per-block partial-sum reduction
    return total / count


def _reference(pred, target, mask=None, *, tau=1.0, lambda_pos=1.0, lambda_vr=0.01):
    """Pure-JAX reference mirroring the PyTorch module (conv1d cross-correlation)."""
    B, T, C = pred.shape
    L = int(6 * tau)
    pad = L // 2
    w = jnp.exp(-jnp.arange(L, dtype=jnp.float32) / tau)
    if mask is None:
        mask = jnp.ones((B, T), jnp.float32)
    m3 = mask[:, :, None]
    count = jnp.sum(mask) * C
    d = pred - target + 1e-12
    pos = jnp.sum(jnp.log(jnp.cosh(d)) * m3) / count
    pp = jnp.pad(pred, ((0, 0), (pad, pad), (0, 0)))
    tp = jnp.pad(target, ((0, 0), (pad, pad), (0, 0)))
    pf = sum(w[k] * pp[:, k:k + T, :] for k in range(L))
    tf = sum(w[k] * tp[:, k:k + T, :] for k in range(L))
    vr = jnp.sum(((pf - tf) ** 2) * m3) / count
    return lambda_pos * pos + lambda_vr * vr


if __name__ == "__main__":
    key = jax.random.PRNGKey(0)
    k1, k2, k3 = jax.random.split(key, 3)
    B, T, C = 2, 16, 8
    pred = jax.random.normal(k1, (B, T, C), jnp.float32)
    target = jax.random.normal(k2, (B, T, C), jnp.float32)
    mask = (jax.random.uniform(k3, (B, T)) > 0.25).astype(jnp.float32)

    # unmasked path
    loss = jax.block_until_ready(
        spike_position_loss_delta(pred, target, tau=1.0, lambda_pos=1.0, lambda_vr=0.01))
    ref = _reference(pred, target, tau=1.0, lambda_pos=1.0, lambda_vr=0.01)
    assert abs(float(loss) - float(ref)) < 1e-4, (float(loss), float(ref))

    # masked path
    loss_m = jax.block_until_ready(
        spike_position_loss_delta(pred, target, mask, tau=1.0, lambda_pos=1.0, lambda_vr=0.01))
    ref_m = _reference(pred, target, mask, tau=1.0, lambda_pos=1.0, lambda_vr=0.01)
    assert abs(float(loss_m) - float(ref_m)) < 1e-4, (float(loss_m), float(ref_m))

    print("KERNEL_OK")
</pallas_src>

<mosaic_0001>
module attributes {stable_mosaic.version = 11 : i64} {
  func.func @_loss_block_kernel(%arg0: i32, %arg1: i32, %arg2: memref<1x8x128xf32, #tpu.memory_space<vmem>>, %arg3: memref<1x8x128xf32, #tpu.memory_space<vmem>>, %arg4: memref<1x1x128xf32, #tpu.memory_space<vmem>>, %arg5: memref<1x1x1x128xf32, #tpu.memory_space<vmem>>) attributes {dimension_semantics = [#tpu.dimension_semantics<parallel>, #tpu.dimension_semantics<parallel>], iteration_bounds = array<i64: 2, 1>, scalar_prefetch = 0 : i64, scratch_operands = 0 : i64, tpu.core_type = #tpu.core_type<tc>, window_params = [{transform_indices = @transform_0, window_bounds = array<i64: 1, 8, 128>}, {transform_indices = @transform_1, window_bounds = array<i64: 1, 8, 128>}, {transform_indices = @transform_2, window_bounds = array<i64: 1, 1, 128>}, {transform_indices = @transform_3, window_bounds = array<i64: 1, 1, 1, 128>}]} {
    %c0 = arith.constant 0 : index
    %c0_0 = arith.constant 0 : index
    %c0_1 = arith.constant 0 : index
    %0 = vector.load %arg2[%c0, %c0_0, %c0_1] : memref<1x8x128xf32, #tpu.memory_space<vmem>>, vector<1x8x128xf32>
    %1 = vector.shape_cast %0 : vector<1x8x128xf32> to vector<8x128xf32>
    %c0_2 = arith.constant 0 : index
    %c0_3 = arith.constant 0 : index
    %c0_4 = arith.constant 0 : index
    %2 = vector.load %arg3[%c0_2, %c0_3, %c0_4] : memref<1x8x128xf32, #tpu.memory_space<vmem>>, vector<1x8x128xf32>
    %3 = vector.shape_cast %2 : vector<1x8x128xf32> to vector<8x128xf32>
    %c0_5 = arith.constant 0 : index
    %c0_6 = arith.constant 0 : index
    %c0_7 = arith.constant 0 : index
    %4 = vector.load %arg4[%c0_5, %c0_6, %c0_7] : memref<1x1x128xf32, #tpu.memory_space<vmem>>, vector<1x1x128xf32>
    %5 = vector.shape_cast %4 : vector<1x1x128xf32> to vector<1x128xf32>
    %6 = arith.subf %1, %3 : vector<8x128xf32>
    %cst = arith.constant 9.99999996E-13 : f32
    %7 = vector.broadcast %cst : f32 to vector<8x128xf32>
    %8 = arith.addf %6, %7 : vector<8x128xf32>
    %9 = math.absf %8 : vector<8x128xf32>
    %cst_8 = arith.constant -2.000000e+00 : f32
    %10 = vector.broadcast %cst_8 : f32 to vector<8x128xf32>
    %11 = arith.mulf %10, %9 : vector<8x128xf32>
    %12 = math.exp %11 : vector<8x128xf32>
    %cst_9 = arith.constant 1.000000e+00 : f32
    %13 = vector.broadcast %cst_9 : f32 to vector<8x128xf32>
    %14 = arith.addf %13, %12 : vector<8x128xf32>
    %15 = math.log %14 : vector<8x128xf32>
    %16 = arith.addf %9, %15 : vector<8x128xf32>
    %cst_10 = arith.constant 0.693147182 : f32
    %17 = vector.broadcast %cst_10 : f32 to vector<8x128xf32>
    %18 = arith.subf %16, %17 : vector<8x128xf32>
    %19 = tpu.iota {dimensions = array<i32: 1>} : vector<8x128xi32>
    %cst_11 = arith.constant 0.000000e+00 : f32
    %20 = vector.broadcast %cst_11 : f32 to vector<8x128xf32>
    %c3_i32 = arith.constant 3 : i32
    %21 = tpu.dynamic_rotate %6 by %c3_i32 dim 1 : vector<8x128xf32>, i32 -> vector<8x128xf32>
    %c3_i32_12 = arith.constant 3 : i32
    %22 = vector.broadcast %c3_i32_12 : i32 to vector<8x128xi32>
    %23 = arith.cmpi sge, %19, %22 : vector<8x128xi32>
    %c131_i32 = arith.constant 131 : i32
    %24 = vector.broadcast %c131_i32 : i32 to vector<8x128xi32>
    %25 = arith.cmpi slt, %19, %24 : vector<8x128xi32>
    %26 = arith.andi %23, %25 : vector<8x128xi1>
    %cst_13 = arith.constant 0.000000e+00 : f32
    %27 = vector.broadcast %cst_13 : f32 to vector<8x128xf32>
    %28 = arith.select %26, %21, %27 : vector<8x128xi1>, vector<8x128xf32>
    %cst_14 = arith.constant 1.000000e+00 : f32
    %29 = vector.broadcast %cst_14 : f32 to vector<8x128xf32>
    %30 = arith.mulf %29, %28 : vector<8x128xf32>
    %31 = arith.addf %20, %30 : vector<8x128xf32>
    %c2_i32 = arith.constant 2 : i32
    %32 = tpu.dynamic_rotate %6 by %c2_i32 dim 1 : vector<8x128xf32>, i32 -> vector<8x128xf32>
    %c2_i32_15 = arith.constant 2 : i32
    %33 = vector.broadcast %c2_i32_15 : i32 to vector<8x128xi32>
    %34 = arith.cmpi sge, %19, %33 : vector<8x128xi32>
    %c130_i32 = arith.constant 130 : i32
    %35 = vector.broadcast %c130_i32 : i32 to vector<8x128xi32>
    %36 = arith.cmpi slt, %19, %35 : vector<8x128xi32>
    %37 = arith.andi %34, %36 : vector<8x128xi1>
    %cst_16 = arith.constant 0.000000e+00 : f32
    %38 = vector.broadcast %cst_16 : f32 to vector<8x128xf32>
    %39 = arith.select %37, %32, %38 : vector<8x128xi1>, vector<8x128xf32>
    %cst_17 = arith.constant 0.36787945 : f32
    %40 = vector.broadcast %cst_17 : f32 to vector<8x128xf32>
    %41 = arith.mulf %40, %39 : vector<8x128xf32>
    %42 = arith.addf %31, %41 : vector<8x128xf32>
    %c1_i32 = arith.constant 1 : i32
    %43 = tpu.dynamic_rotate %6 by %c1_i32 dim 1 : vector<8x128xf32>, i32 -> vector<8x128xf32>
    %c1_i32_18 = arith.constant 1 : i32
    %44 = vector.broadcast %c1_i32_18 : i32 to vector<8x128xi32>
    %45 = arith.cmpi sge, %19, %44 : vector<8x128xi32>
    %c129_i32 = arith.constant 129 : i32
    %46 = vector.broadcast %c129_i32 : i32 to vector<8x128xi32>
    %47 = arith.cmpi slt, %19, %46 : vector<8x128xi32>
    %48 = arith.andi %45, %47 : vector<8x128xi1>
    %cst_19 = arith.constant 0.000000e+00 : f32
    %49 = vector.broadcast %cst_19 : f32 to vector<8x128xf32>
    %50 = arith.select %48, %43, %49 : vector<8x128xi1>, vector<8x128xf32>
    %cst_20 = arith.constant 0.135335281 : f32
    %51 = vector.broadcast %cst_20 : f32 to vector<8x128xf32>
    %52 = arith.mulf %51, %50 : vector<8x128xf32>
    %53 = arith.addf %42, %52 : vector<8x128xf32>
    %c0_i32 = arith.constant 0 : i32
    %54 = vector.broadcast %c0_i32 : i32 to vector<8x128xi32>
    %55 = arith.cmpi sge, %19, %54 : vector<8x128xi32>
    %c128_i32 = arith.constant 128 : i32
    %56 = vector.broadcast %c128_i32 : i32 to vector<8x128xi32>
    %57 = arith.cmpi slt, %19, %56 : vector<8x128xi32>
    %58 = arith.andi %55, %57 : vector<8x128xi1>
    %cst_21 = arith.constant 0.000000e+00 : f32
    %59 = vector.broadcast %cst_21 : f32 to vector<8x128xf32>
    %60 = arith.select %58, %6, %59 : vector<8x128xi1>, vector<8x128xf32>
    %cst_22 = arith.constant 0.0497870669 : f32
    %61 = vector.broadcast %cst_22 : f32 to vector<8x128xf32>
    %62 = arith.mulf %61, %60 : vector<8x128xf32>
    %63 = arith.addf %53, %62 : vector<8x128xf32>
    %c127_i32 = arith.constant 127 : i32
    %64 = tpu.dynamic_rotate %6 by %c127_i32 dim 1 : vector<8x128xf32>, i32 -> vector<8x128xf32>
    %c-1_i32 = arith.constant -1 : i32
    %65 = vector.broadcast %c-1_i32 : i32 to vector<8x128xi32>
    %66 = arith.cmpi sge, %19, %65 : vector<8x128xi32>
    %c127_i32_23 = arith.constant 127 : i32
    %67 = vector.broadcast %c127_i32_23 : i32 to vector<8x128xi32>
    %68 = arith.cmpi slt, %19, %67 : vector<8x128xi32>
    %69 = arith.andi %66, %68 : vector<8x128xi1>
    %cst_24 = arith.constant 0.000000e+00 : f32
    %70 = vector.broadcast %cst_24 : f32 to vector<8x128xf32>
    %71 = arith.select %69, %64, %70 : vector<8x128xi1>, vector<8x128xf32>
    %cst_25 = arith.constant 0.0183156393 : f32
    %72 = vector.broadcast %cst_25 : f32 to vector<8x128xf32>
    %73 = arith.mulf %72, %71 : vector<8x128xf32>
    %74 = arith.addf %63, %73 : vector<8x128xf32>
    %c126_i32 = arith.constant 126 : i32
    %75 = tpu.dynamic_rotate %6 by %c126_i32 dim 1 : vector<8x128xf32>, i32 -> vector<8x128xf32>
    %c-2_i32 = arith.constant -2 : i32
    %76 = vector.broadcast %c-2_i32 : i32 to vector<8x128xi32>
    %77 = arith.cmpi sge, %19, %76 : vector<8x128xi32>
    %c126_i32_26 = arith.constant 126 : i32
    %78 = vector.broadcast %c126_i32_26 : i32 to vector<8x128xi32>
    %79 = arith.cmpi slt, %19, %78 : vector<8x128xi32>
    %80 = arith.andi %77, %79 : vector<8x128xi1>
    %cst_27 = arith.constant 0.000000e+00 : f32
    %81 = vector.broadcast %cst_27 : f32 to vector<8x128xf32>
    %82 = arith.select %80, %75, %81 : vector<8x128xi1>, vector<8x128xf32>
    %cst_28 = arith.constant 0.006737947 : f32
    %83 = vector.broadcast %cst_28 : f32 to vector<8x128xf32>
    %84 = arith.mulf %83, %82 : vector<8x128xf32>
    %85 = arith.addf %74, %84 : vector<8x128xf32>
    %cst_29 = arith.constant 1.000000e+00 : f32
    %86 = vector.broadcast %cst_29 : f32 to vector<8x128xf32>
    %87 = arith.mulf %86, %18 : vector<8x128xf32>
    %88 = arith.mulf %85, %85 : vector<8x128xf32>
    %cst_30 = arith.constant 0.00999999977 : f32
    %89 = vector.broadcast %cst_30 : f32 to vector<8x128xf32>
    %90 = arith.mulf %89, %88 : vector<8x128xf32>
    %91 = arith.addf %87, %90 : vector<8x128xf32>
    %92 = vector.broadcast %5 : vector<1x128xf32> to vector<8x128xf32>
    %93 = arith.mulf %91, %92 : vector<8x128xf32>
    %94 = vector.shape_cast %93 : vector<8x128xf32> to vector<1x8x128xf32>
    %cst_31 = arith.constant dense<0.000000e+00> : vector<1xf32>
    %95 = vector.multi_reduction <add>, %94, %cst_31 [1, 2] : vector<1x8x128xf32> to vector<1xf32>
    %96 = vector.shape_cast %95 : vector<1xf32> to vector<1x1x1xf32>
    %97 = vector.extract %96[0, 0, 0] : f32 from vector<1x1x1xf32>
    %cst_32 = arith.constant 0.000000e+00 : f32
    %98 = vector.broadcast %cst_32 : f32 to vector<1x1x1x128xf32>
    %99 = vector.broadcast %97 : f32 to vector<1x1x1x128xf32>
    %100 = arith.addf %99, %98 : vector<1x1x1x128xf32>
    %c0_33 = arith.constant 0 : index
    %c0_34 = arith.constant 0 : index
    %c0_35 = arith.constant 0 : index
    %c0_36 = arith.constant 0 : index
    %101 = vector.load %arg5[%c0_33, %c0_34, %c0_35, %c0_36] : memref<1x1x1x128xf32, #tpu.memory_space<vmem>>, vector<1x1x1x128xf32>
    tpu.vector_store %arg5[%c0_33, %c0_34, %c0_35, %c0_36], %100 {strides = array<i32>} : memref<1x1x1x128xf32, #tpu.memory_space<vmem>>, vector<1x1x1x128xf32>,
    return
  }
  func.func @transform_0(%arg0: i32, %arg1: i32) -> (i32, i32, i32) {
    %c0_i32 = arith.constant 0 : i32
    %c0_i32_0 = arith.constant 0 : i32
    return %arg0, %arg1, %c0_i32 : i32, i32, i32
  }
  func.func @transform_1(%arg0: i32, %arg1: i32) -> (i32, i32, i32) {
    %c0_i32 = arith.constant 0 : i32
    %c0_i32_0 = arith.constant 0 : i32
    return %arg0, %arg1, %c0_i32 : i32, i32, i32
  }
  func.func @transform_2(%arg0: i32, %arg1: i32) -> (i32, i32, i32) {
    %c0_i32 = arith.constant 0 : i32
    %c0_i32_0 = arith.constant 0 : i32
    %c0_i32_1 = arith.constant 0 : i32
    return %arg0, %c0_i32, %c0_i32_0 : i32, i32, i32
  }
  func.func @transform_3(%arg0: i32, %arg1: i32) -> (i32, i32, i32, i32) {
    %c0_i32 = arith.constant 0 : i32
    %c0_i32_0 = arith.constant 0 : i32
    %c0_i32_1 = arith.constant 0 : i32
    return %arg0, %arg1, %c0_i32, %c0_i32_0 : i32, i32, i32, i32
  }
}

</mosaic_0001>

<llo_original>
// kernel: tpu_custom_call.1
$region0: #{tpu_custom_call.1}
  #allocation0 [shape = 'u32[]', space=smem, size = 0x4, offset = 0x4, fixed_abs, tag = 'smem constant byte address 0x4 - core index']
  #allocation1 [shape = 'u32[144,128]{1,0:T(1,128)}', space=vmem, size = 0x12000, scoped, tag = 'internal scratch']
  %s0 = inlined_call_operand.hbm [shape: f32[2,8,128], index: 0, kind: input, shape index: {}]
  %s1 = inlined_call_operand.hbm [shape: f32[2,8,128], index: 1, kind: input, shape index: {}]
  %s2 = inlined_call_operand.vmem [shape: f32[2,1,128], index: 2, kind: input, shape index: {}]
  %s3 = inlined_call_operand.hbm [shape: f32[2,1,1,128], index: 3, kind: output, shape index: {}]
  %s4 = sld [smem:[#allocation0]]
  $region53: #{tpu_custom_call.1} parent=0
    _
  %s6 = ssub.s32 1, %s4
  %s7 = scalar_select 0, %s6, %s4
  $region1: #{tpu_custom_call.1} parent=0
    #allocation2 [shape = 'u8[8192]{0}', space=vmem, size = 0x2000, scoped, tag = 'input window, operand 0']
    #allocation3 [shape = 's32[2]{0}', space=sflag, size = 0x8, scoped, tag = 'scoped memory for tpu_custom_call.1']
    #allocation4 [shape = 's32[2]{0}', space=sflag, size = 0x8, scoped, tag = 'scoped memory for tpu_custom_call.1']
    #allocation5 [shape = 'u8[8192]{0}', space=vmem, size = 0x2000, scoped, tag = 'input window, operand 1']
    #allocation6 [shape = 's32[2]{0}', space=sflag, size = 0x8, scoped, tag = 'scoped memory for tpu_custom_call.1']
    #allocation7 [shape = 'u8[1024]{0}', space=vmem, size = 0x400, scoped, tag = 'output window, operand 0']
    %8 = vsyncpa [#allocation3], 0
    %s9 = scalar_lea.sflag [#allocation3], 1
    %10 = vsyncpa %s9, 0
    %11 = vsyncpa [#allocation6], 0
    %s12 = scalar_lea.sflag [#allocation6], 1
    %13 = vsyncpa %s12, 0
    %14 = vsyncpa [#allocation4], 0
    %s15 = scalar_lea.sflag [#allocation4], 1
    %16 = vsyncpa %s15, 0
    loop: start=0, step=1, limit=4
    $region2: #{tpu_custom_call.1} parent=1 // loop_pre_header
      _
    $region3: #{tpu_custom_call.1} parent=1 // loop_header
      %s18 = sphi 0, %s22
      %p19 = scmp.ge.s32.totalorder %s18, 4
      %s25 = sphi 0, %s37
      %s26 = sphi 0, %s33
      %s27 = sphi 0, %s25
      %s28 = sphi 0, %s26
      %s29 = sphi 0, %s27
      %s30 = sphi 0, %s28
      %s42 = sphi 0, %s44
      %s45 = sphi 0, %s42
      %s46 = sphi 0, %s45
      %s62 = sphi 0, %s46
      %s70 = sphi 0, %s72
      %s73 = sphi 0, %s70
      %s74 = sphi 0, %s73
      %s90 = sphi 0, %s74
      %s96 = sphi 0, %s98
      %s99 = sphi 0, %s96
      %s100 = sphi 0, %s99
      %s116 = sphi 0, %s100
      %s124 = sphi 0, %s126
      %s127 = sphi 0, %s124
      %s128 = sphi 0, %s127
      %s144 = sphi 0, %s128
    $region4: #{tpu_custom_call.1} parent=1 // loop_header_branch
      %21 = sbr.rel (%p19) target = $region8
    $region5: #{tpu_custom_call.1} parent=1 // loop_body
      %s23 = ssub.s32 %s18, 1
      %s24 = ssub.s32 %s18, 2
      %s31 = sadd.s32 1, %s26
      %p32 = scmp.ge.s32.totalorder %s31, 1
      %s33 = scalar_select %p32, 0, %s31
      %s34 = sadd.s32 1, %s25
      %s35 = scalar_select %p32, %s34, %s25
      %p36 = scmp.ge.s32.totalorder %s35, 2
      %s37 = scalar_select %p36, 0, %s35
      %s38 = ssub.s32 %s25, %s37
      %s39 = ssub.s32 %s26, %s33
      %s40 = sor.u32 %s38, %s39
      %p41 = scmp.eq.s32.totalorder %s40, 0
      %s43 = sadd.s32 %s42, 1
      %s44 = scalar_select %p41, %s42, %s43
      %p47 = pneg %p41
      %p48 = scmp.eq.s32.totalorder %s18, 1
      %p49 = por %p47, %p48
      %p50 = scmp.ne.s32.totalorder %s42, %s45
      %p51 = scmp.eq.s32.totalorder %s18, 0
      %p52 = por %p50, %p51
      %p53 = scmp.ne.s32.totalorder %s42, %s45
      %p54 = scmp.eq.s32.totalorder %s23, 1
      %p55 = por %p53, %p54
      %p56 = scmp.ne.s32.totalorder %s45, %s46
      %p57 = scmp.eq.s32.totalorder %s23, 0
      %p58 = por %p56, %p57
      %p59 = scmp.ne.s32.totalorder %s45, %s46
      %p60 = scmp.eq.s32.totalorder %s24, 1
      %p61 = por %p59, %p60
      %p63 = scmp.ne.s32.totalorder %s46, %s62
      %p64 = scmp.eq.s32.totalorder %s24, 0
      %p65 = por %p63, %p64
      %s66 = ssub.s32 %s25, %s37
      %s67 = ssub.s32 %s26, %s33
      %s68 = sor.u32 %s66, %s67
      %p69 = scmp.eq.s32.totalorder %s68, 0
      %s71 = sadd.s32 %s70, 1
      %s72 = scalar_select %p69, %s70, %s71
      %p75 = pneg %p69
      %p76 = scmp.eq.s32.totalorder %s18, 1
      %p77 = por %p75, %p76
      %p78 = scmp.ne.s32.totalorder %s70, %s73
      %p79 = scmp.eq.s32.totalorder %s18, 0
      %p80 = por %p78, %p79
      %p81 = scmp.ne.s32.totalorder %s70, %s73
      %p82 = scmp.eq.s32.totalorder %s23, 1
      %p83 = por %p81, %p82
      %p84 = scmp.ne.s32.totalorder %s73, %s74
      %p85 = scmp.eq.s32.totalorder %s23, 0
      %p86 = por %p84, %p85
      %p87 = scmp.ne.s32.totalorder %s73, %s74
      %p88 = scmp.eq.s32.totalorder %s24, 1
      %p89 = por %p87, %p88
      %p91 = scmp.ne.s32.totalorder %s74, %s90
      %p92 = scmp.eq.s32.totalorder %s24, 0
      %p93 = por %p91, %p92
      %s94 = ssub.s32 %s25, %s37
      %p95 = scmp.eq.s32.totalorder %s94, 0
      %s97 = sadd.s32 %s96, 1
      %s98 = scalar_select %p95, %s96, %s97
      %p101 = pneg %p95
      %p102 = scmp.eq.s32.totalorder %s18, 1
      %p103 = por %p101, %p102
      %p104 = scmp.ne.s32.totalorder %s96, %s99
      %p105 = scmp.eq.s32.totalorder %s18, 0
      %p106 = por %p104, %p105
      %p107 = scmp.ne.s32.totalorder %s96, %s99
      %p108 = scmp.eq.s32.totalorder %s23, 1
      %p109 = por %p107, %p108
      %p110 = scmp.ne.s32.totalorder %s99, %s100
      %p111 = scmp.eq.s32.totalorder %s23, 0
      %p112 = por %p110, %p111
      %p113 = scmp.ne.s32.totalorder %s99, %s100
      %p114 = scmp.eq.s32.totalorder %s24, 1
      %p115 = por %p113, %p114
      %p117 = scmp.ne.s32.totalorder %s100, %s116
      %p118 = scmp.eq.s32.totalorder %s24, 0
      %p119 = por %p117, %p118
      %s120 = ssub.s32 %s25, %s37
      %s121 = ssub.s32 %s26, %s33
      %s122 = sor.u32 %s120, %s121
      %p123 = scmp.eq.s32.totalorder %s122, 0
      %s125 = sadd.s32 %s124, 1
      %s126 = scalar_select %p123, %s124, %s125
      %p129 = pneg %p123
      %p130 = scmp.eq.s32.totalorder %s18, 1
      %p131 = por %p129, %p130
      %p132 = scmp.ne.s32.totalorder %s124, %s127
      %p133 = scmp.eq.s32.totalorder %s18, 0
      %p134 = por %p132, %p133
      %p135 = scmp.ne.s32.totalorder %s124, %s127
      %p136 = scmp.eq.s32.totalorder %s23, 1
      %p137 = por %p135, %p136
      %p138 = scmp.ne.s32.totalorder %s127, %s128
      %p139 = scmp.eq.s32.totalorder %s23, 0
      %p140 = por %p138, %p139
      %p141 = scmp.ne.s32.totalorder %s127, %s128
      %p142 = scmp.eq.s32.totalorder %s24, 1
      %p143 = por %p141, %p142
      %p145 = scmp.ne.s32.totalorder %s128, %s144
      %p146 = scmp.eq.s32.totalorder %s24, 0
      %p147 = por %p145, %p146
      %p148 = scmp.le.s32.totalorder 1, %s18
      %p149 = scmp.lt.s32.totalorder %s18, 3
      %p150 = pnand %p148, %p149
      %p151 = pneg %p150
      // Predicated region
      $region9: #{tpu_custom_call.1} parent=5 // pred_check
        _
      $region10: #{tpu_custom_call.1} parent=5 // pred_check_branch
        %153 = sbr.rel (%p150) target = $region12
      $region11: #{tpu_custom_call.1} parent=5 // pred_region
        %s154 = ssub.s32 %s18, 1
      $region12: #{tpu_custom_call.1} parent=5 // pred_fallthru
        _
      %p155 = scmp.lt.s32.totalorder %s18, 2
      // Predicated region
      $region13: #{tpu_custom_call.1} parent=5 // pred_check
        %p156 = pneg %p155
      $region14: #{tpu_custom_call.1} parent=5 // pred_check_branch
        %158 = sbr.rel (%p156) target = $region16
      $region15: #{tpu_custom_call.1} parent=5 // pred_region
        // Predicated region
        $region17: #{tpu_custom_call.1} parent=15 // pred_check
          %p159 = pneg %p52
        $region18: #{tpu_custom_call.1} parent=15 // pred_check_branch
          %161 = sbr.rel (%p159) target = $region20
        $region19: #{tpu_custom_call.1} parent=15 // pred_region
          %s162 = sand.u32 %s42, 1
          %s163 = scalar_lea.sflag [#allocation3], %s162
          %s164 = sand.u32 %s42, 1
          %s165 = smul.addr %s164, 8
          %s166 = scalar_lea.vmem [#allocation2], %s165
          %s168 = ssub.s32 128, 128
          %169 = vsyncadd %s163, %s168
          %s170 = sadd.s32 %s26, %s25
          %s171 = smul.addr %s170, 128
          %s172 = scalar_lea.hbm %s0, %s171
          %s174 = sshll.u32 %s166, 4
          %s175 = int_to_ptr.vmem [resolvable:$true] %s174
          %177 = dma.hbm_to_vmem [thread:$0]  %s172, 128, %s175, %s163
        $region20: #{tpu_custom_call.1} parent=15 // pred_fallthru
          _
        // Predicated region
        $region21: #{tpu_custom_call.1} parent=15 // pred_check
          %p178 = pneg %p80
        $region22: #{tpu_custom_call.1} parent=15 // pred_check_branch
          %180 = sbr.rel (%p178) target = $region24
        $region23: #{tpu_custom_call.1} parent=15 // pred_region
          %s181 = sand.u32 %s70, 1
          %s182 = scalar_lea.sflag [#allocation6], %s181
          %s183 = sand.u32 %s70, 1
          %s184 = smul.addr %s183, 8
          %s185 = scalar_lea.vmem [#allocation5], %s184
          %s187 = ssub.s32 128, 128
          %188 = vsyncadd %s182, %s187
          %s189 = sadd.s32 %s26, %s25
          %s190 = smul.addr %s189, 128
          %s191 = scalar_lea.hbm %s1, %s190
          %s193 = sshll.u32 %s185, 4
          %s194 = int_to_ptr.vmem [resolvable:$true] %s193
          %196 = dma.hbm_to_vmem [thread:$0]  %s191, 128, %s194, %s182
        $region24: #{tpu_custom_call.1} parent=15 // pred_fallthru
          _
        // Predicated region
        $region25: #{tpu_custom_call.1} parent=15 // pred_check
          %p197 = pneg %p106
        $region26: #{tpu_custom_call.1} parent=15 // pred_check_branch
          %199 = sbr.rel (%p197) target = $region28
        $region27: #{tpu_custom_call.1} parent=15 // pred_region
          %p200 = scmp.lt.s32.totalorder %s25, 1
          %s201 = scalar_select %p200, %s25, 1
          %s202 = scalar_lea.vmem %s2, %s201
        $region28: #{tpu_custom_call.1} parent=15 // pred_fallthru
          _
      $region16: #{tpu_custom_call.1} parent=5 // pred_fallthru
        _
      %p203 = scmp.le.s32.totalorder 1, %s18
      %p204 = scmp.lt.s32.totalorder %s18, 3
      %p205 = pnand %p203, %p204
      %p206 = pneg %p205
      // Predicated region
      $region29: #{tpu_custom_call.1} parent=5 // pred_check
        _
      $region30: #{tpu_custom_call.1} parent=5 // pred_check_branch
        %208 = sbr.rel (%p205) target = $region32
      $region31: #{tpu_custom_call.1} parent=5 // pred_region
        %s209 = ssub.s32 %s18, 1
        %s210 = sand.u32 %s45, 1
        %s211 = scalar_lea.sflag [#allocation3], %s210
        %s212 = sand.u32 %s45, 1
        %s213 = smul.addr %s212, 8
        %s214 = scalar_lea.vmem [#allocation2], %s213
        // Predicated region
        $region33: #{tpu_custom_call.1} parent=31 // pred_check
          %p215 = pneg %p58
        $region34: #{tpu_custom_call.1} parent=31 // pred_check_branch
          %217 = sbr.rel (%p215) target = $region36
        $region35: #{tpu_custom_call.1} parent=31 // pred_region
          %218 = dma.done %s211, 128
        $region36: #{tpu_custom_call.1} parent=31 // pred_fallthru
          _
        %s219 = sand.u32 %s73, 1
        %s220 = scalar_lea.sflag [#allocation6], %s219
        %s221 = sand.u32 %s73, 1
        %s222 = smul.addr %s221, 8
        %s223 = scalar_lea.vmem [#allocation5], %s222
        // Predicated region
        $region37: #{tpu_custom_call.1} parent=31 // pred_check
          %p224 = pneg %p86
        $region38: #{tpu_custom_call.1} parent=31 // pred_check_branch
          %226 = sbr.rel (%p224) target = $region40
        $region39: #{tpu_custom_call.1} parent=31 // pred_region
          %227 = dma.done %s220, 128
        $region40: #{tpu_custom_call.1} parent=31 // pred_fallthru
          _
        %s228 = sand.u32 %s45, 1
        %s229 = scalar_lea.sflag [#allocation3], %s228
        %s230 = sand.u32 %s45, 1
        %s231 = smul.addr %s230, 8
        %s232 = scalar_lea.vmem [#allocation2], %s231
        %p233 = pneg %p58
        %p234 = pneg %p55
        %s235 = sand.u32 %s73, 1
        %s236 = scalar_lea.sflag [#allocation6], %s235
        %s237 = sand.u32 %s73, 1
        %s238 = smul.addr %s237, 8
        %s239 = scalar_lea.vmem [#allocation5], %s238
        %p240 = pneg %p86
        %p241 = pneg %p83
        %p242 = scmp.lt.s32.totalorder %s27, 1
        %s243 = scalar_select %p242, %s27, 1
        %s244 = scalar_lea.vmem %s2, %s243
        %p245 = pneg %p112
        %p246 = pneg %p109
        %p247 = pneg %p140
        %p248 = pneg %p137
        %s249 = sand.u32 %s127, 1
        %s250 = scalar_lea.sflag [#allocation4], %s249
        %s251 = sand.u32 %s127, 1
        %s252 = scalar_lea.vmem [#allocation7], %s251
        %p253 = scmp.lt.s32.totalorder %s27, 1
        %s254 = scalar_select %p253, %s27, 1
        %s255 = scalar_lea.vmem %s2, %s254
        %v256 = vld [vmem:[%s214] sm:$0xff]
        %v257 = vld [vmem:[%s223] sm:$0xff]
        %v258 = vld [vmem:[%s255] sm:$0x1]
        %v259 = vsub.f32 %v256, %v257
        %v260 = vadd.f32 %v259, 1e-12
        %v261 = vand.u32 2147483647, %v260
        %v262 = vmul.f32 %v261, -2.0
        %v263 = vmul.f32 %v262, 1.442695
        %v264 = vpow.pop %v263
        %v265 = vadd.f32 %v264, 1.0
        %v266 = vlog2.pop %v265
        %v267 = vmul.f32 %v266, 0.6931472
        %v268 = vadd.f32 %v261, %v267
        %v269 = vsub.f32 %v268, 0.6931472
        %v270 = vlaneseq
        %v271 = vand.u32 %v270, 127
        %272 = vrot.lane.b32.xlu0 %v259, 3
        %v273 = vpop.permute.xlu0 %272
        %vm274 = vcmp.ge.s32.totalorder %v271, 3
        %vm275 = vcmp.lt.s32.totalorder %v271, 131
        %vm276 = vmand %vm274, %vm275
        %v277 = vsel %vm276, %v273, 0.0
        %v278 = vadd.f32 %v277, 0.0
        %279 = vrot.lane.b32.xlu0 %v259, 2
        %v280 = vpop.permute.xlu0 %279
        %vm281 = vcmp.ge.s32.totalorder %v271, 2
        %vm282 = vcmp.lt.s32.totalorder %v271, 130
        %vm283 = vmand %vm281, %vm282
        %v284 = vsel %vm283, %v280, 0.0
        %v285 = vmul.f32 %v284, 0.36787945
        %v286 = vadd.f32 %v278, %v285
        %287 = vrot.lane.b32.xlu0 %v259, 1
        %v288 = vpop.permute.xlu0 %287
        %vm289 = vcmp.ge.s32.totalorder %v271, 1
        %vm290 = vcmp.lt.s32.totalorder %v271, 129
        %vm291 = vmand %vm289, %vm290
        %v292 = vsel %vm291, %v288, 0.0
        %v293 = vmul.f32 %v292, 0.13533528
        %v294 = vadd.f32 %v286, %v293
        %vm295 = vcmp.ge.s32.totalorder %v271, 0
        %vm296 = vcmp.lt.s32.totalorder %v271, 128
        %vm297 = vmand %vm295, %vm296
        %v298 = vsel %vm297, %v259, 0.0
        %v299 = vmul.f32 %v298, 0.049787067
        %v300 = vadd.f32 %v294, %v299
        %301 = vrot.lane.b32.xlu0 %v259, 127
        %v302 = vpop.permute.xlu0 %301
        %vm303 = vcmp.ge.s32.totalorder %v271, 4294967295
        %vm304 = vcmp.lt.s32.totalorder %v271, 127
        %vm305 = vmand %vm303, %vm304
        %v306 = vsel %vm305, %v302, 0.0
        %v307 = vmul.f32 %v306, 0.01831564
        %v308 = vadd.f32 %v300, %v307
        %309 = vrot.lane.b32.xlu0 %v259, 126
        %v310 = vpop.permute.xlu0 %309
        %vm311 = vcmp.ge.s32.totalorder %v271, 4294967294
        %vm312 = vcmp.lt.s32.totalorder %v271, 126
        %vm313 = vmand %vm311, %vm312
        %v314 = vsel %vm313, %v310, 0.0
        %v315 = vmul.f32 %v314, 0.006737947
        %v316 = vadd.f32 %v308, %v315
        %v317 = vmul.f32 %v316, %v316
        %v318 = vmul.f32 %v317, 0.01
        %v319 = vadd.f32 %v269, %v318
        %v321 = vlaneseq
        %v322 = vshrl.u32 %v321, 7
        %v323 = vsub.s32 0, %v322
        %v324 = vrot.slane %v258, %v323
        %v326 = vmul.f32 %v319, %v324
        %327 = vadd.xlane.f32.xlu0 %v326
        %v328 = vpop.xlane.xlu0 %327
        %v329 = vrot.slane %v328, 4
        %v330 = vadd.f32 %v328, %v329
        %v331 = vrot.slane %v330, 2
        %v332 = vadd.f32 %v330, %v331
        %v333 = vrot.slane %v332, 1
        %v334 = vadd.f32 %v332, %v333
        %s335 = vtos %v334
        %v336 = vstv %s335
        %v337 = vadd.f32 %v336, 0.0
        %338 = vst [vmem:[%s252] sm:$0x1] %v337
        %s339 = sand.u32 %s127, 1
        %s340 = scalar_lea.sflag [#allocation4], %s339
        %s341 = sand.u32 %s127, 1
        %s342 = scalar_lea.vmem [#allocation7], %s341
        // Predicated region
        $region41: #{tpu_custom_call.1} parent=31 // pred_check
          %p343 = pneg %p137
        $region42: #{tpu_custom_call.1} parent=31 // pred_check_branch
          %345 = sbr.rel (%p343) target = $region44
        $region43: #{tpu_custom_call.1} parent=31 // pred_region
          %s347 = ssub.s32 16, 16
          %348 = vsyncadd %s340, %s347
          %s349 = sadd.s32 %s28, %s27
          %s350 = smul.addr %s349, 16
          %s351 = scalar_lea.hbm %s3, %s350
          %s353 = sshll.u32 %s342, 4
          %s354 = int_to_ptr.vmem [resolvable:$true] %s353
          %356 = dma.vmem_to_hbm [thread:$0]  %s354, 16, %s351, %s340
        $region44: #{tpu_custom_call.1} parent=31 // pred_fallthru
          _
      $region32: #{tpu_custom_call.1} parent=5 // pred_fallthru
        _
      %p357 = scmp.le.s32.totalorder 2, %s18
      // Predicated region
      $region45: #{tpu_custom_call.1} parent=5 // pred_check
        %p358 = pneg %p357
      $region46: #{tpu_custom_call.1} parent=5 // pred_check_branch
        %360 = sbr.rel (%p358) target = $region48
      $region47: #{tpu_custom_call.1} parent=5 // pred_region
        %s361 = ssub.s32 %s18, 2
        // Predicated region
        $region49: #{tpu_custom_call.1} parent=47 // pred_check
          %p362 = pneg %p143
        $region50: #{tpu_custom_call.1} parent=47 // pred_check_branch
          %364 = sbr.rel (%p362) target = $region52
        $region51: #{tpu_custom_call.1} parent=47 // pred_region
          %s365 = sand.u32 %s128, 1
          %s366 = scalar_lea.sflag [#allocation4], %s365
          %s367 = sand.u32 %s128, 1
          %s368 = scalar_lea.vmem [#allocation7], %s367
          %369 = dma.done %s366, 16
        $region52: #{tpu_custom_call.1} parent=47 // pred_fallthru
          _
      $region48: #{tpu_custom_call.1} parent=5 // pred_fallthru
        _
    $region6: #{tpu_custom_call.1} parent=1 // loop_footer
      %s22 = sadd.s32 1, %s18
    $region7: #{tpu_custom_call.1} parent=1 // loop_footer_branch
      %17 = sbr.rel target = $region3
    $region8: #{tpu_custom_call.1} parent=1 // loop_exit
      _
    %370 = vsyncpa [#allocation3], 1
    %s371 = scalar_lea.sflag [#allocation3], 1
    %372 = vsyncpa %s371, 1
    %373 = vsyncpa [#allocation6], 1
    %s374 = scalar_lea.sflag [#allocation6], 1
    %375 = vsyncpa %s374, 1
    %376 = vsyncpa [#allocation4], 1
    %s377 = scalar_lea.sflag [#allocation4], 1
    %378 = vsyncpa %s377, 1

</llo_original>
